<compile_context>
chip_gen: v6e
topology: v6e:2x2x1
jax: 0.10.0
libtpu: 0.0.40
codegen_flags: <defaults>
</compile_context>

<pallas_src>
import functools

import jax
import jax.numpy as jnp
from jax import lax
from jax.experimental import pallas as pl
from jax.experimental.pallas import tpu as pltpu


_LANE = 128  # align every matmul-participating dim to 128 (satisfies (8,128))


def _round_up(v, m):
    return ((v + m - 1) // m) * m


def _choose_block(dim, target, min_blocks=1):
    """Return (block, padded_dim).

    Prefers a multiple-of-128 block <= target that divides round_up(dim, 128)
    (no extra padding).  If the divisor search would collapse the tile by >=2x
    (e.g. dim=640 with target=512), it pads the dim up to a multiple of the
    target instead, so tiles never silently degrade to 128-wide (HBM-roofline
    loss).  min_blocks>1 requests at least that many blocks (v7x megacore)."""
    d128 = _round_up(max(dim, 1), _LANE)
    tgt = min(_round_up(target, _LANE), d128)
    if min_blocks > 1 and d128 >= min_blocks * _LANE:
        tgt = min(tgt, (d128 // min_blocks // _LANE) * _LANE)
    tgt = max(tgt, _LANE)
    blk = _LANE
    for cand in range(tgt, _LANE - 1, -_LANE):
        if d128 % cand == 0:
            blk = cand
            break
    if blk * 2 <= tgt:          # collapsed too far -> pad the dim instead
        blk = tgt
    return blk, _round_up(d128, blk)


def _pad2d(a, rows, cols):
    pr, pc = rows - a.shape[0], cols - a.shape[1]
    if pr == 0 and pc == 0:
        return a
    return jnp.pad(a, ((0, pr), (0, pc)))


def _default_vmem_limit():
    """Generation-aware scoped-VMEM request: ~3/4 of physical, capped at 96 MiB."""
    try:
        cap = pltpu.get_tpu_info().vmem_capacity_bytes
    except Exception:
        cap = 64 * 1024 * 1024
    return int(min(cap * 3 // 4, 96 * 1024 * 1024))


# ----------------------------------------------------------------------------
# Kernel 1: ATy = A^T @ y   (accumulate directly into the f32 output block)
# ----------------------------------------------------------------------------
def _aty_kernel(a_ref, y_ref, o_ref, *, precision):
    @pl.when(pl.program_id(2) == 0)
    def _():
        o_ref[...] = jnp.zeros_like(o_ref)

    # Contract dim 0 of both tiles: (bm, bn)^T @ (bm, bys) -> (bn, bys).
    # NOTE: transposed-LHS dot; if a Mosaic dump shows a per-tile vxpose
    # becoming the binding slot on v6e, pre-transpose A once in the wrapper.
    o_ref[...] += lax.dot_general(
        a_ref[...],
        y_ref[...],
        dimension_numbers=(((0,), (0,)), ((), ())),
        preferred_element_type=jnp.float32,
        precision=precision,
    )


# ----------------------------------------------------------------------------
# Kernel 2: fused MLPs + activations + combine
#   wcat/bcat hold [Wf1 | Wf2 | Wg] block-interleaved along the feature axis,
#   so the three ATy linears are one matmul and one sigmoid pass.
# ----------------------------------------------------------------------------
def _fused_kernel(x_ref, aty_ref, wx_ref, bx_ref, wcat_ref, bcat_ref, o_ref, *,
                  precision):
    def _mm(a, b):
        return lax.dot_general(
            a, b, (((1,), (0,)), ((), ())),
            preferred_element_type=jnp.float32, precision=precision)

    xh = _mm(x_ref[...], wx_ref[...]) + bx_ref[...]
    xh = jnp.maximum(xh, 0.01 * xh)                    # LeakyReLU(0.01)

    z = _mm(aty_ref[...], wcat_ref[...]) + bcat_ref[...]          # (br, 3*bf)
    s = pl.reciprocal(1.0 + jnp.exp(-z), approx=True)              # sigmoid (EUP)

    bf = s.shape[1] // 3
    y12 = s[:, :bf] + s[:, bf:2 * bf]                  # y1 + y2
    g = s[:, 2 * bf:]

    o_ref[...] = (xh * (1.0 + y12) + g).astype(o_ref.dtype)


# ----------------------------------------------------------------------------
# Wrapper
# ----------------------------------------------------------------------------
def x_update_forward(A, x, y, wx_t, bx, wf1_t, bf1, wf2_t, bf2, wg_t, bg, *,
                     precision=lax.Precision.DEFAULT,
                     vmem_limit_bytes=None):
    """A: (m, n), x: (n, x_size), y: (m, y_size); weights already (in, out)."""
    m, n = A.shape
    n2, xs = x.shape
    m2, ys = y.shape
    fs = wx_t.shape[1]
    assert n2 == n and m2 == m
    assert wx_t.shape == (xs, fs)
    assert wf1_t.shape == (ys, fs) and wf2_t.shape == (ys, fs)
    assert wg_t.shape == (ys, fs)

    f32 = jnp.float32
    if vmem_limit_bytes is None:
        vmem_limit_bytes = _default_vmem_limit()

    # ---------------- tiling / padding decisions ----------------
    # Shared row block for both kernels; >=2 blocks keeps both v7x TCs busy.
    bn, n_p = _choose_block(n, 512, min_blocks=2)
    # m is the kernel-1 contraction dim (zero padding is exact).
    bm, m_p = _choose_block(m, 512)
    # Keep the full y_size dim in one block when reasonable: A is then streamed
    # from HBM exactly once in kernel 1 and kernel 2 needs no K loop over ys.
    ys_128 = _round_up(ys, _LANE)
    if ys_128 <= 2048:
        bys, ys_p = ys_128, ys_128
    else:
        bys, ys_p = _choose_block(ys, 512)
    xs_p = _round_up(xs, _LANE)
    fs_128 = _round_up(fs, _LANE)

    # Feature block of the fused kernel: prefer the whole feature dim (weights
    # then have a constant block index -> DMA'd once for the entire grid);
    # shrink to fit the VMEM budget otherwise (v7x: 64 MiB physical).
    budget = int(0.8 * vmem_limit_bytes)

    def _fused_bytes(br_, bf_):
        wgt = xs_p * bf_ + ys_p * 3 * bf_ + 4 * bf_    # weight + bias blocks
        act = br_ * (xs_p + ys_p)                      # x + ATy blocks
        out = br_ * bf_
        return 8 * (wgt + act + out)                   # f32, double-buffered

    bf = _LANE
    for cand in (fs_128, 1024, 512, 256, 128):
        if cand > fs_128 or cand % _LANE:
            continue
        bf = cand
        if _fused_bytes(bn, cand) <= budget:
            break
    # TODO(synk): add an inner K-pipeline (pltpu.emit_pipeline over xs/ys) for
    # very large hidden sizes instead of relying on bf shrinking alone.
    fs_p = _round_up(fs_128, bf)
    n_fb = fs_p // bf
    n_rb = n_p // bn

    # ---------------- padding (no-op when already aligned) ----------------
    A_p = _pad2d(A.astype(f32), m_p, n_p)
    y_p = _pad2d(y.astype(f32), m_p, ys_p)
    x_p = _pad2d(x.astype(f32), n_p, xs_p)
    wx_p = _pad2d(wx_t.astype(f32), xs_p, fs_p)
    bx_p = _pad2d(bx.astype(f32).reshape(1, -1), 1, fs_p)

    # Block-interleaved concatenation of the three y-side weights/biases:
    # feature block j of wcat holds [Wf1_j | Wf2_j | Wg_j], each bf wide.
    wf1_p = _pad2d(wf1_t.astype(f32), ys_p, fs_p)
    wf2_p = _pad2d(wf2_t.astype(f32), ys_p, fs_p)
    wg_p = _pad2d(wg_t.astype(f32), ys_p, fs_p)
    wcat = jnp.stack([wf1_p, wf2_p, wg_p], axis=0)           # (3, ys_p, fs_p)
    wcat = wcat.reshape(3, ys_p, n_fb, bf).transpose(1, 2, 0, 3)
    wcat = wcat.reshape(ys_p, 3 * fs_p)

    bf1_p = _pad2d(bf1.astype(f32).reshape(1, -1), 1, fs_p)
    bf2_p = _pad2d(bf2.astype(f32).reshape(1, -1), 1, fs_p)
    bg_p = _pad2d(bg.astype(f32).reshape(1, -1), 1, fs_p)
    bcat = jnp.stack([bf1_p, bf2_p, bg_p], axis=0)           # (3, 1, fs_p)
    bcat = bcat.reshape(3, 1, n_fb, bf).transpose(1, 2, 0, 3)
    bcat = bcat.reshape(1, 3 * fs_p)

    # ---------------- kernel 1: ATy = A^T @ y ----------------
    aty = pl.pallas_call(
        functools.partial(_aty_kernel, precision=precision),
        out_shape=jax.ShapeDtypeStruct((n_p, ys_p), f32),
        grid_spec=pltpu.PrefetchScalarGridSpec(
            num_scalar_prefetch=0,
            grid=(n_p // bn, ys_p // bys, m_p // bm),
            in_specs=[
                pl.BlockSpec((bm, bn), lambda i, j, k: (k, i)),    # A
                pl.BlockSpec((bm, bys), lambda i, j, k: (k, j)),   # y
            ],
            out_specs=pl.BlockSpec((bn, bys), lambda i, j, k: (i, j)),
        ),
        compiler_params=pltpu.CompilerParams(
            dimension_semantics=("parallel", "parallel", "arbitrary"),
            vmem_limit_bytes=vmem_limit_bytes,
        ),
    )(A_p, y_p)

    # ---------------- kernel 2: fused MLPs ----------------
    # If the feature dim needs multiple blocks, iterate feat on the OUTER axis
    # so weight blocks stay resident across the entire row sweep (no re-DMA).
    if n_fb > 1:
        grid2 = (n_fb, n_rb)
        rix = lambda a, b: b
        fix = lambda a, b: a
    else:
        grid2 = (n_rb, n_fb)
        rix = lambda a, b: a
        fix = lambda a, b: b

    out_p = pl.pallas_call(
        functools.partial(_fused_kernel, precision=precision),
        out_shape=jax.ShapeDtypeStruct((n_p, fs_p), f32),
        grid_spec=pltpu.PrefetchScalarGridSpec(
            num_scalar_prefetch=0,
            grid=grid2,
            in_specs=[
                pl.BlockSpec((bn, xs_p), lambda a, b: (rix(a, b), 0)),      # x
                pl.BlockSpec((bn, ys_p), lambda a, b: (rix(a, b), 0)),      # ATy
                pl.BlockSpec((xs_p, bf), lambda a, b: (0, fix(a, b))),      # Wx^T
                pl.BlockSpec((1, bf), lambda a, b: (0, fix(a, b))),         # bx
                pl.BlockSpec((ys_p, 3 * bf), lambda a, b: (0, fix(a, b))),  # Wcat
                pl.BlockSpec((1, 3 * bf), lambda a, b: (0, fix(a, b))),     # bcat
            ],
            out_specs=pl.BlockSpec((bn, bf),
                                   lambda a, b: (rix(a, b), fix(a, b))),
        ),
        compiler_params=pltpu.CompilerParams(
            dimension_semantics=("parallel", "parallel"),
            vmem_limit_bytes=vmem_limit_bytes,
        ),
    )(x_p, aty, wx_p, bx_p, wcat, bcat)

    return out_p[:n, :fs]


# ----------------------------------------------------------------------------
# Pure-JAX reference (same matmul precision as the kernel)
# ----------------------------------------------------------------------------
def _reference(A, x, y, wx_t, bx, wf1_t, bf1, wf2_t, bf2, wg_t, bg, precision):
    mm = functools.partial(jnp.matmul, precision=precision)
    sig = jax.nn.sigmoid
    xh = mm(x, wx_t) + bx
    xh = jnp.where(xh > 0.0, xh, 0.01 * xh)
    aty = mm(A.T, y)
    y1 = sig(mm(aty, wf1_t) + bf1)
    y2 = sig(mm(aty, wf2_t) + bf2)
    g = sig(mm(aty, wg_t) + bg)
    return xh + (y1 + y2) * xh + g


if __name__ == "__main__":
    key = jax.random.PRNGKey(0)
    ks = jax.random.split(key, 11)

    # Small shapes implied by the forward:
    #   A: (m, n), x: (n, x_size), y: (m, y_size), out: (n, feat_size)
    m, n = 256, 256
    x_size, y_size, feat_size = 128, 128, 256

    A = jax.random.normal(ks[0], (m, n), dtype=jnp.float32) * 0.05
    x = jax.random.normal(ks[1], (n, x_size), dtype=jnp.float32)
    y = jax.random.normal(ks[2], (m, y_size), dtype=jnp.float32)

    s = 0.05
    wx_t = jax.random.normal(ks[3], (x_size, feat_size), dtype=jnp.float32) * s
    bx = jax.random.normal(ks[4], (feat_size,), dtype=jnp.float32) * s
    wf1_t = jax.random.normal(ks[5], (y_size, feat_size), dtype=jnp.float32) * s
    bf1 = jax.random.normal(ks[6], (feat_size,), dtype=jnp.float32) * s
    wf2_t = jax.random.normal(ks[7], (y_size, feat_size), dtype=jnp.float32) * s
    bf2 = jax.random.normal(ks[8], (feat_size,), dtype=jnp.float32) * s
    wg_t = jax.random.normal(ks[9], (y_size, feat_size), dtype=jnp.float32) * s
    bg = jax.random.normal(ks[10], (feat_size,), dtype=jnp.float32) * s

    prec = lax.Precision.DEFAULT   # single-pass bf16 MXU; HIGHEST for f32-exact
    out = x_update_forward(A, x, y, wx_t, bx, wf1_t, bf1, wf2_t, bf2, wg_t, bg,
                           precision=prec)
    out = jax.block_until_ready(out)

    ref = _reference(A, x, y, wx_t, bx, wf1_t, bf1, wf2_t, bf2, wg_t, bg, prec)
    assert out.shape == (n, feat_size)
    # Tolerance covers bf16-pass accumulation-order noise + the approximate EUP
    # reciprocal in the fused sigmoid (outputs are O(1)).
    assert jnp.allclose(out, ref, atol=5e-3, rtol=5e-3), "mismatch vs reference"

    print("KERNEL_OK")
</pallas_src>

<mosaic_0001>
module attributes {stable_mosaic.version = 11 : i64} {
  func.func @_aty_kernel(%arg0: i32, %arg1: i32, %arg2: i32, %arg3: memref<256x128xf32, #tpu.memory_space<vmem>>, %arg4: memref<256x128xf32, #tpu.memory_space<vmem>>, %arg5: memref<128x128xf32, #tpu.memory_space<vmem>>) attributes {dimension_semantics = [#tpu.dimension_semantics<parallel>, #tpu.dimension_semantics<parallel>, #tpu.dimension_semantics<arbitrary>], iteration_bounds = array<i64: 2, 1, 1>, scalar_prefetch = 0 : i64, scratch_operands = 0 : i64, tpu.core_type = #tpu.core_type<tc>, window_params = [{transform_indices = @transform_0, window_bounds = array<i64: 256, 128>}, {transform_indices = @transform_1, window_bounds = array<i64: 256, 128>}, {transform_indices = @transform_2, window_bounds = array<i64: 128, 128>}]} {
    %c0_i32 = arith.constant 0 : i32
    %0 = arith.cmpi eq, %arg2, %c0_i32 : i32
    %1 = arith.extui %0 : i1 to i32
    %c0_i32_0 = arith.constant 0 : i32
    %2 = arith.cmpi ne, %1, %c0_i32_0 : i32
    scf.if %2 {
      %cst_8 = arith.constant 0.000000e+00 : f32
      %9 = vector.broadcast %cst_8 : f32 to vector<128x128xf32>
      %c0_9 = arith.constant 0 : index
      %c0_10 = arith.constant 0 : index
      %10 = vector.load %arg5[%c0_9, %c0_10] : memref<128x128xf32, #tpu.memory_space<vmem>>, vector<128x128xf32>
      tpu.vector_store %arg5[%c0_9, %c0_10], %9 {strides = array<i32>} : memref<128x128xf32, #tpu.memory_space<vmem>>, vector<128x128xf32>,
    } else {
    }
    %c0 = arith.constant 0 : index
    %c0_1 = arith.constant 0 : index
    %3 = vector.load %arg5[%c0, %c0_1] : memref<128x128xf32, #tpu.memory_space<vmem>>, vector<128x128xf32>
    %c0_2 = arith.constant 0 : index
    %c0_3 = arith.constant 0 : index
    %4 = vector.load %arg3[%c0_2, %c0_3] : memref<256x128xf32, #tpu.memory_space<vmem>>, vector<256x128xf32>
    %c0_4 = arith.constant 0 : index
    %c0_5 = arith.constant 0 : index
    %5 = vector.load %arg4[%c0_4, %c0_5] : memref<256x128xf32, #tpu.memory_space<vmem>>, vector<256x128xf32>
    %cst = arith.constant dense<0.000000e+00> : vector<128x128xf32>
    %6 = tpu.matmul %4, %5, %cst {dimension_numbers = #tpu.dot_dimension_numbers<[0], [0], [1], [1], [0, 1, 1, 1], [], []>} : vector<256x128xf32>, vector<256x128xf32>, vector<128x128xf32> -> vector<128x128xf32>
    %7 = arith.addf %3, %6 : vector<128x128xf32>
    %c0_6 = arith.constant 0 : index
    %c0_7 = arith.constant 0 : index
    %8 = vector.load %arg5[%c0_6, %c0_7] : memref<128x128xf32, #tpu.memory_space<vmem>>, vector<128x128xf32>
    tpu.vector_store %arg5[%c0_6, %c0_7], %7 {strides = array<i32>} : memref<128x128xf32, #tpu.memory_space<vmem>>, vector<128x128xf32>,
    return
  }
  func.func @transform_0(%arg0: i32, %arg1: i32, %arg2: i32) -> (i32, i32) {
    %c0_i32 = arith.constant 0 : i32
    return %arg2, %arg0 : i32, i32
  }
  func.func @transform_1(%arg0: i32, %arg1: i32, %arg2: i32) -> (i32, i32) {
    %c0_i32 = arith.constant 0 : i32
    return %arg2, %arg1 : i32, i32
  }
  func.func @transform_2(%arg0: i32, %arg1: i32, %arg2: i32) -> (i32, i32) {
    %c0_i32 = arith.constant 0 : i32
    return %arg0, %arg1 : i32, i32
  }
}

</mosaic_0001>

<llo_original>
// kernel: tpu_custom_call.1
$region0: #{tpu_custom_call.1}
  #allocation0 [shape = 'u32[]', space=smem, size = 0x4, offset = 0x4, fixed_abs, tag = 'smem constant byte address 0x4 - core index']
  #allocation1 [shape = 'u32[144,128]{1,0:T(1,128)}', space=vmem, size = 0x12000, scoped, tag = 'internal scratch']
  %s0 = inlined_call_operand.hbm [shape: f32[256,256], index: 0, kind: input, shape index: {}]
  %s1 = inlined_call_operand.hbm [shape: f32[256,128], index: 1, kind: input, shape index: {}]
  %s2 = inlined_call_operand.hbm [shape: f32[256,128], index: 2, kind: output, shape index: {}]
  %s3 = sld [smem:[#allocation0]]
  $region53: #{tpu_custom_call.1} parent=0
    _
  %s5 = ssub.s32 1, %s3
  %s6 = scalar_select 0, %s5, %s3
  $region1: #{tpu_custom_call.1} parent=0
    #allocation2 [shape = 'u8[262144]{0}', space=vmem, size = 0x40000, scoped, tag = 'input window, operand 0']
    #allocation3 [shape = 's32[2]{0}', space=sflag, size = 0x8, scoped, tag = 'scoped memory for tpu_custom_call.1']
    #allocation4 [shape = 's32[2]{0}', space=sflag, size = 0x8, scoped, tag = 'scoped memory for tpu_custom_call.1']
    #allocation5 [shape = 'u8[131072]{0}', space=vmem, size = 0x20000, scoped, tag = 'input window, operand 1, single buffered']
    #allocation6 [shape = 's32[1]{0}', space=sflag, size = 0x4, scoped, tag = 'scoped memory for tpu_custom_call.1']
    #allocation7 [shape = 'u8[131072]{0}', space=vmem, size = 0x20000, scoped, tag = 'output window, operand 0']
    %7 = vsyncpa [#allocation3], 0
    %s8 = scalar_lea.sflag [#allocation3], 1
    %9 = vsyncpa %s8, 0
    %10 = vsyncpa [#allocation6], 0
    %11 = vsyncpa [#allocation4], 0
    %s12 = scalar_lea.sflag [#allocation4], 1
    %13 = vsyncpa %s12, 0
    loop: start=0, step=1, limit=4
    $region2: #{tpu_custom_call.1} parent=1 // loop_pre_header
      _
    $region3: #{tpu_custom_call.1} parent=1 // loop_header
      %s15 = sphi 0, %s19
      %p16 = scmp.ge.s32.totalorder %s15, 4
      %s22 = sphi 0, %s41
      %s23 = sphi 0, %s37
      %s24 = sphi 0, %s33
      %s25 = sphi 0, %s22
      %s26 = sphi 0, %s23
      %s27 = sphi 0, %s24
      %s28 = sphi 0, %s25
      %s29 = sphi 0, %s26
      %s30 = sphi 0, %s27
      %s46 = sphi 0, %s48
      %s49 = sphi 0, %s46
      %s50 = sphi 0, %s49
      %s66 = sphi 0, %s50
      %s74 = sphi 0, %s76
      %s77 = sphi 0, %s74
      %s78 = sphi 0, %s77
      %s94 = sphi 0, %s78
      %s102 = sphi 0, %s104
      %s105 = sphi 0, %s102
      %s106 = sphi 0, %s105
      %s122 = sphi 0, %s106
    $region4: #{tpu_custom_call.1} parent=1 // loop_header_branch
      %18 = sbr.rel (%p16) target = $region8
    $region5: #{tpu_custom_call.1} parent=1 // loop_body
      %s20 = ssub.s32 %s15, 1
      %s21 = ssub.s32 %s15, 2
      %s31 = sadd.s32 1, %s24
      %p32 = scmp.ge.s32.totalorder %s31, 1
      %s33 = scalar_select %p32, 0, %s31
      %s34 = sadd.s32 1, %s23
      %s35 = scalar_select %p32, %s34, %s23
      %p36 = scmp.ge.s32.totalorder %s35, 1
      %s37 = scalar_select %p36, 0, %s35
      %s38 = sadd.s32 1, %s22
      %s39 = scalar_select %p36, %s38, %s22
      %p40 = scmp.ge.s32.totalorder %s39, 2
      %s41 = scalar_select %p40, 0, %s39
      %s42 = ssub.s32 %s24, %s33
      %s43 = ssub.s32 %s22, %s41
      %s44 = sor.u32 %s42, %s43
      %p45 = scmp.eq.s32.totalorder %s44, 0
      %s47 = sadd.s32 %s46, 1
      %s48 = scalar_select %p45, %s46, %s47
      %p51 = pneg %p45
      %p52 = scmp.eq.s32.totalorder %s15, 1
      %p53 = por %p51, %p52
      %p54 = scmp.ne.s32.totalorder %s46, %s49
      %p55 = scmp.eq.s32.totalorder %s15, 0
      %p56 = por %p54, %p55
      %p57 = scmp.ne.s32.totalorder %s46, %s49
      %p58 = scmp.eq.s32.totalorder %s20, 1
      %p59 = por %p57, %p58
      %p60 = scmp.ne.s32.totalorder %s49, %s50
      %p61 = scmp.eq.s32.totalorder %s20, 0
      %p62 = por %p60, %p61
      %p63 = scmp.ne.s32.totalorder %s49, %s50
      %p64 = scmp.eq.s32.totalorder %s21, 1
      %p65 = por %p63, %p64
      %p67 = scmp.ne.s32.totalorder %s50, %s66
      %p68 = scmp.eq.s32.totalorder %s21, 0
      %p69 = por %p67, %p68
      %s70 = ssub.s32 %s24, %s33
      %s71 = ssub.s32 %s23, %s37
      %s72 = sor.u32 %s70, %s71
      %p73 = scmp.eq.s32.totalorder %s72, 0
      %s75 = sadd.s32 %s74, 1
      %s76 = scalar_select %p73, %s74, %s75
      %p79 = pneg %p73
      %p80 = scmp.eq.s32.totalorder %s15, 1
      %p81 = por %p79, %p80
      %p82 = scmp.ne.s32.totalorder %s74, %s77
      %p83 = scmp.eq.s32.totalorder %s15, 0
      %p84 = por %p82, %p83
      %p85 = scmp.ne.s32.totalorder %s74, %s77
      %p86 = scmp.eq.s32.totalorder %s20, 1
      %p87 = por %p85, %p86
      %p88 = scmp.ne.s32.totalorder %s77, %s78
      %p89 = scmp.eq.s32.totalorder %s20, 0
      %p90 = por %p88, %p89
      %p91 = scmp.ne.s32.totalorder %s77, %s78
      %p92 = scmp.eq.s32.totalorder %s21, 1
      %p93 = por %p91, %p92
      %p95 = scmp.ne.s32.totalorder %s78, %s94
      %p96 = scmp.eq.s32.totalorder %s21, 0
      %p97 = por %p95, %p96
      %s98 = ssub.s32 %s22, %s41
      %s99 = ssub.s32 %s23, %s37
      %s100 = sor.u32 %s98, %s99
      %p101 = scmp.eq.s32.totalorder %s100, 0
      %s103 = sadd.s32 %s102, 1
      %s104 = scalar_select %p101, %s102, %s103
      %p107 = pneg %p101
      %p108 = scmp.eq.s32.totalorder %s15, 1
      %p109 = por %p107, %p108
      %p110 = scmp.ne.s32.totalorder %s102, %s105
      %p111 = scmp.eq.s32.totalorder %s15, 0
      %p112 = por %p110, %p111
      %p113 = scmp.ne.s32.totalorder %s102, %s105
      %p114 = scmp.eq.s32.totalorder %s20, 1
      %p115 = por %p113, %p114
      %p116 = scmp.ne.s32.totalorder %s105, %s106
      %p117 = scmp.eq.s32.totalorder %s20, 0
      %p118 = por %p116, %p117
      %p119 = scmp.ne.s32.totalorder %s105, %s106
      %p120 = scmp.eq.s32.totalorder %s21, 1
      %p121 = por %p119, %p120
      %p123 = scmp.ne.s32.totalorder %s106, %s122
      %p124 = scmp.eq.s32.totalorder %s21, 0
      %p125 = por %p123, %p124
      %p126 = scmp.le.s32.totalorder 1, %s15
      %p127 = scmp.lt.s32.totalorder %s15, 3
      %p128 = pnand %p126, %p127
      %p129 = pneg %p128
      // Predicated region
      $region9: #{tpu_custom_call.1} parent=5 // pred_check
        _
      $region10: #{tpu_custom_call.1} parent=5 // pred_check_branch
        %131 = sbr.rel (%p128) target = $region12
      $region11: #{tpu_custom_call.1} parent=5 // pred_region
        %s132 = ssub.s32 %s15, 1
        // Predicated region
        $region13: #{tpu_custom_call.1} parent=11 // pred_check
          %p133 = pneg %p90
        $region14: #{tpu_custom_call.1} parent=11 // pred_check_branch
          %135 = sbr.rel (%p133) target = $region16
        $region15: #{tpu_custom_call.1} parent=11 // pred_region
          %s136 = smul.u32 32, %s27
          %s138 = ssub.s32 4096, 4096
          %139 = vsyncadd [#allocation6], %s138
          %s140 = sadd.s32 %s26, %s136
          %s141 = smul.addr %s140, 128
          %s142 = scalar_lea.hbm %s1, %s141
          %s143 = sshll.u32 [#allocation5], 4
          %s144 = int_to_ptr.vmem [resolvable:$true] %s143
          %149 = dma.hbm_to_vmem [thread:$0]  %s142, 4096, %s144, [#allocation6], 128, 128, 8
        $region16: #{tpu_custom_call.1} parent=11 // pred_fallthru
          _
      $region12: #{tpu_custom_call.1} parent=5 // pred_fallthru
        _
      %p150 = scmp.lt.s32.totalorder %s15, 2
      // Predicated region
      $region17: #{tpu_custom_call.1} parent=5 // pred_check
        %p151 = pneg %p150
      $region18: #{tpu_custom_call.1} parent=5 // pred_check_branch
        %153 = sbr.rel (%p151) target = $region20
      $region19: #{tpu_custom_call.1} parent=5 // pred_region
        // Predicated region
        $region21: #{tpu_custom_call.1} parent=19 // pred_check
          %p154 = pneg %p56
        $region22: #{tpu_custom_call.1} parent=19 // pred_check_branch
          %156 = sbr.rel (%p154) target = $region24
        $region23: #{tpu_custom_call.1} parent=19 // pred_region
          %s157 = sand.u32 %s46, 1
          %s158 = scalar_lea.sflag [#allocation3], %s157
          %s159 = sand.u32 %s46, 1
          %s160 = smul.addr %s159, 256
          %s161 = scalar_lea.vmem [#allocation2], %s160
          %s162 = smul.u32 32, %s24
          %s164 = ssub.s32 4096, 4096
          %165 = vsyncadd %s158, %s164
          %s166 = smul.addr %s162, 2
          %s167 = sadd.s32 %s22, %s166
          %s168 = smul.addr %s167, 128
          %s169 = scalar_lea.hbm %s0, %s168
          %s170 = sshll.u32 %s161, 4
          %s171 = int_to_ptr.vmem [resolvable:$true] %s170
          %176 = dma.hbm_to_vmem [thread:$0]  %s169, 4096, %s171, %s158, 256, 128, 8
        $region24: #{tpu_custom_call.1} parent=19 // pred_fallthru
          _
      $region20: #{tpu_custom_call.1} parent=5 // pred_fallthru
        _
      %p177 = scmp.le.s32.totalorder 1, %s15
      %p178 = scmp.lt.s32.totalorder %s15, 3
      %p179 = pnand %p177, %p178
      %p180 = pneg %p179
      // Predicated region
      $region25: #{tpu_custom_call.1} parent=5 // pred_check
        _
      $region26: #{tpu_custom_call.1} parent=5 // pred_check_branch
        %182 = sbr.rel (%p179) target = $region28
      $region27: #{tpu_custom_call.1} parent=5 // pred_region
        %s183 = ssub.s32 %s15, 1
        %s184 = sand.u32 %s49, 1
        %s185 = scalar_lea.sflag [#allocation3], %s184
        %s186 = sand.u32 %s49, 1
        %s187 = smul.addr %s186, 256
        %s188 = scalar_lea.vmem [#allocation2], %s187
        // Predicated region
        $region29: #{tpu_custom_call.1} parent=27 // pred_check
          %p189 = pneg %p62
        $region30: #{tpu_custom_call.1} parent=27 // pred_check_branch
          %191 = sbr.rel (%p189) target = $region32
        $region31: #{tpu_custom_call.1} parent=27 // pred_region
          %192 = dma.done %s185, 4096
        $region32: #{tpu_custom_call.1} parent=27 // pred_fallthru
          _
        // Predicated region
        $region33: #{tpu_custom_call.1} parent=27 // pred_check
          %p193 = pneg %p90
        $region34: #{tpu_custom_call.1} parent=27 // pred_check_branch
          %195 = sbr.rel (%p193) target = $region36
        $region35: #{tpu_custom_call.1} parent=27 // pred_region
          %196 = dma.done [#allocation6], 4096
        $region36: #{tpu_custom_call.1} parent=27 // pred_fallthru
          _
        %s197 = sand.u32 %s49, 1
        %s198 = scalar_lea.sflag [#allocation3], %s197
        %s199 = sand.u32 %s49, 1
        %s200 = smul.addr %s199, 256
        %s201 = scalar_lea.vmem [#allocation2], %s200
        %p202 = pneg %p62
        %p203 = pneg %p59
        %p204 = pneg %p90
        %p205 = pneg %p87
        %p206 = pneg %p118
        %p207 = pneg %p115
        %s208 = sand.u32 %s105, 1
        %s209 = scalar_lea.sflag [#allocation4], %s208
        %s210 = sand.u32 %s105, 1
        %s211 = smul.addr %s210, 128
        %s212 = scalar_lea.vmem [#allocation7], %s211
        %s213 = smul.u32 32, %s27
        %s214 = smul.u32 32, %s27
        %s215 = smul.u32 16, %s25
        %p216 = scmp.eq.s32.totalorder %s27, 0
        // Predicated region
        $region37: #{tpu_custom_call.1} parent=27 // pred_check
          %p217 = pneg %p216
        $region38: #{tpu_custom_call.1} parent=27 // pred_check_branch
          %219 = sbr.rel (%p217) target = $region40
        $region39: #{tpu_custom_call.1} parent=27 // pred_region
          %220 = vst [vmem:[%s212] sm:$0xff] 0.0
          %221 = vst [vmem:[%s212 + $0x8] sm:$0xff] 0.0
          %222 = vst [vmem:[%s212 + $0x10] sm:$0xff] 0.0
          %223 = vst [vmem:[%s212 + $0x18] sm:$0xff] 0.0
          %224 = vst [vmem:[%s212 + $0x20] sm:$0xff] 0.0
          %225 = vst [vmem:[%s212 + $0x28] sm:$0xff] 0.0
          %226 = vst [vmem:[%s212 + $0x30] sm:$0xff] 0.0
          %227 = vst [vmem:[%s212 + $0x38] sm:$0xff] 0.0
          %228 = vst [vmem:[%s212 + $0x40] sm:$0xff] 0.0
          %229 = vst [vmem:[%s212 + $0x48] sm:$0xff] 0.0
          %230 = vst [vmem:[%s212 + $0x50] sm:$0xff] 0.0
          %231 = vst [vmem:[%s212 + $0x58] sm:$0xff] 0.0
          %232 = vst [vmem:[%s212 + $0x60] sm:$0xff] 0.0
          %233 = vst [vmem:[%s212 + $0x68] sm:$0xff] 0.0
          %234 = vst [vmem:[%s212 + $0x70] sm:$0xff] 0.0
          %235 = vst [vmem:[%s212 + $0x78] sm:$0xff] 0.0
        $region40: #{tpu_custom_call.1} parent=27 // pred_fallthru
          _
        %v236 = vld [vmem:[%s212] sm:$0xff]
        %v237 = vld [vmem:[%s212 + $0x8] sm:$0xff]
        %v238 = vld [vmem:[%s212 + $0x10] sm:$0xff]
        %v239 = vld [vmem:[%s212 + $0x18] sm:$0xff]
        %v240 = vld [vmem:[%s212 + $0x20] sm:$0xff]
        %v241 = vld [vmem:[%s212 + $0x28] sm:$0xff]
        %v242 = vld [vmem:[%s212 + $0x30] sm:$0xff]
        %v243 = vld [vmem:[%s212 + $0x38] sm:$0xff]
        %v244 = vld [vmem:[%s212 + $0x40] sm:$0xff]
        %v245 = vld [vmem:[%s212 + $0x48] sm:$0xff]
        %v246 = vld [vmem:[%s212 + $0x50] sm:$0xff]
        %v247 = vld [vmem:[%s212 + $0x58] sm:$0xff]
        %v248 = vld [vmem:[%s212 + $0x60] sm:$0xff]
        %v249 = vld [vmem:[%s212 + $0x68] sm:$0xff]
        %v250 = vld [vmem:[%s212 + $0x70] sm:$0xff]
        %v251 = vld [vmem:[%s212 + $0x78] sm:$0xff]
        %v252 = vld [vmem:[%s188] sm:$0xff]
        %v253 = vld [vmem:[%s188 + $0x8] sm:$0xff]
        %v254 = vld [vmem:[%s188 + $0x10] sm:$0xff]
        %v255 = vld [vmem:[%s188 + $0x18] sm:$0xff]
        %v256 = vld [vmem:[%s188 + $0x20] sm:$0xff]
        %v257 = vld [vmem:[%s188 + $0x28] sm:$0xff]
        %v258 = vld [vmem:[%s188 + $0x30] sm:$0xff]
        %v259 = vld [vmem:[%s188 + $0x38] sm:$0xff]
        %v260 = vld [vmem:[%s188 + $0x40] sm:$0xff]
        %v261 = vld [vmem:[%s188 + $0x48] sm:$0xff]
        %v262 = vld [vmem:[%s188 + $0x50] sm:$0xff]
        %v263 = vld [vmem:[%s188 + $0x58] sm:$0xff]
        %v264 = vld [vmem:[%s188 + $0x60] sm:$0xff]
        %v265 = vld [vmem:[%s188 + $0x68] sm:$0xff]
        %v266 = vld [vmem:[%s188 + $0x70] sm:$0xff]
        %v267 = vld [vmem:[%s188 + $0x78] sm:$0xff]
        %v268 = vld [vmem:[%s188 + $0x80] sm:$0xff]
        %v269 = vld [vmem:[%s188 + $0x88] sm:$0xff]
        %v270 = vld [vmem:[%s188 + $0x90] sm:$0xff]
        %v271 = vld [vmem:[%s188 + $0x98] sm:$0xff]
        %v272 = vld [vmem:[%s188 + $0xa0] sm:$0xff]
        %v273 = vld [vmem:[%s188 + $0xa8] sm:$0xff]
        %v274 = vld [vmem:[%s188 + $0xb0] sm:$0xff]
        %v275 = vld [vmem:[%s188 + $0xb8] sm:$0xff]
        %v276 = vld [vmem:[%s188 + $0xc0] sm:$0xff]
        %v277 = vld [vmem:[%s188 + $0xc8] sm:$0xff]
        %v278 = vld [vmem:[%s188 + $0xd0] sm:$0xff]
        %v279 = vld [vmem:[%s188 + $0xd8] sm:$0xff]
        %v280 = vld [vmem:[%s188 + $0xe0] sm:$0xff]
        %v281 = vld [vmem:[%s188 + $0xe8] sm:$0xff]
        %v282 = vld [vmem:[%s188 + $0xf0] sm:$0xff]
        %v283 = vld [vmem:[%s188 + $0xf8] sm:$0xff]
        %v284 = vld [vmem:[#allocation5] sm:$0xff]
        %v285 = vld [vmem:[#allocation5 + $0x8] sm:$0xff]
        %v286 = vld [vmem:[#allocation5 + $0x10] sm:$0xff]
        %v287 = vld [vmem:[#allocation5 + $0x18] sm:$0xff]
        %v288 = vld [vmem:[#allocation5 + $0x20] sm:$0xff]
        %v289 = vld [vmem:[#allocation5 + $0x28] sm:$0xff]
        %v290 = vld [vmem:[#allocation5 + $0x30] sm:$0xff]
        %v291 = vld [vmem:[#allocation5 + $0x38] sm:$0xff]
        %v292 = vld [vmem:[#allocation5 + $0x40] sm:$0xff]
        %v293 = vld [vmem:[#allocation5 + $0x48] sm:$0xff]
        %v294 = vld [vmem:[#allocation5 + $0x50] sm:$0xff]
        %v295 = vld [vmem:[#allocation5 + $0x58] sm:$0xff]
        %v296 = vld [vmem:[#allocation5 + $0x60] sm:$0xff]
        %v297 = vld [vmem:[#allocation5 + $0x68] sm:$0xff]
        %v298 = vld [vmem:[#allocation5 + $0x70] sm:$0xff]
        %v299 = vld [vmem:[#allocation5 + $0x78] sm:$0xff]
        %v300 = vld [vmem:[#allocation5 + $0x80] sm:$0xff]
        %v301 = vld [vmem:[#allocation5 + $0x88] sm:$0xff]
        %v302 = vld [vmem:[#allocation5 + $0x90] sm:$0xff]
        %v303 = vld [vmem:[#allocation5 + $0x98] sm:$0xff]
        %v304 = vld [vmem:[#allocation5 + $0xa0] sm:$0xff]
        %v305 = vld [vmem:[#allocation5 + $0xa8] sm:$0xff]
        %v306 = vld [vmem:[#allocation5 + $0xb0] sm:$0xff]
        %v307 = vld [vmem:[#allocation5 + $0xb8] sm:$0xff]
        %v308 = vld [vmem:[#allocation5 + $0xc0] sm:$0xff]
        %v309 = vld [vmem:[#allocation5 + $0xc8] sm:$0xff]
        %v310 = vld [vmem:[#allocation5 + $0xd0] sm:$0xff]
        %v311 = vld [vmem:[#allocation5 + $0xd8] sm:$0xff]
        %v312 = vld [vmem:[#allocation5 + $0xe0] sm:$0xff]
        %v313 = vld [vmem:[#allocation5 + $0xe8] sm:$0xff]
        %v314 = vld [vmem:[#allocation5 + $0xf0] sm:$0xff]
        %v315 = vld [vmem:[#allocation5 + $0xf8] sm:$0xff]
        %316 = vxpose.xlu0.b32.start [1/16] %v252, 128
        %317 = vxpose.xlu0.b32.cont [2/16] %v253, 128
        %318 = vxpose.xlu0.b32.cont [3/16] %v254, 128
        %319 = vxpose.xlu0.b32.cont [4/16] %v255, 128
        %320 = vxpose.xlu0.b32.cont [5/16] %v256, 128
        %321 = vxpose.xlu0.b32.cont [6/16] %v257, 128
        %322 = vxpose.xlu0.b32.cont [7/16] %v258, 128
        %323 = vxpose.xlu0.b32.cont [8/16] %v259, 128
        %324 = vxpose.xlu0.b32.cont [9/16] %v260, 128
        %325 = vxpose.xlu0.b32.cont [10/16] %v261, 128
        %326 = vxpose.xlu0.b32.cont [11/16] %v262, 128
        %327 = vxpose.xlu0.b32.cont [12/16] %v263, 128
        %328 = vxpose.xlu0.b32.cont [13/16] %v264, 128
        %329 = vxpose.xlu0.b32.cont [14/16] %v265, 128
        %330 = vxpose.xlu0.b32.cont [15/16] %v266, 128
        %331 = vxpose.xlu0.b32.end [16/16] %v267, 128
        %v332 = vpop.trf.xlu0
        %v333 = vpop.trf.xlu0
        %v334 = vpop.trf.xlu0
        %v335 = vpop.trf.xlu0
        %v336 = vpop.trf.xlu0
        %v337 = vpop.trf.xlu0
        %v338 = vpop.trf.xlu0
        %v339 = vpop.trf.xlu0
        %v340 = vpop.trf.xlu0
        %v341 = vpop.trf.xlu0
        %v342 = vpop.trf.xlu0
        %v343 = vpop.trf.xlu0
        %v344 = vpop.trf.xlu0
        %v345 = vpop.trf.xlu0
        %v346 = vpop.trf.xlu0
        %v347 = vpop.trf.xlu0
        %348 = vxpose.xlu0.b32.start [1/16] %v268, 128
        %349 = vxpose.xlu0.b32.cont [2/16] %v269, 128
        %350 = vxpose.xlu0.b32.cont [3/16] %v270, 128
        %351 = vxpose.xlu0.b32.cont [4/16] %v271, 128
        %352 = vxpose.xlu0.b32.cont [5/16] %v272, 128
        %353 = vxpose.xlu0.b32.cont [6/16] %v273, 128
        %354 = vxpose.xlu0.b32.cont [7/16] %v274, 128
        %355 = vxpose.xlu0.b32.cont [8/16] %v275, 128
        %356 = vxpose.xlu0.b32.cont [9/16] %v276, 128
        %357 = vxpose.xlu0.b32.cont [10/16] %v277, 128
        %358 = vxpose.xlu0.b32.cont [11/16] %v278, 128
        %359 = vxpose.xlu0.b32.cont [12/16] %v279, 128
        %360 = vxpose.xlu0.b32.cont [13/16] %v280, 128
        %361 = vxpose.xlu0.b32.cont [14/16] %v281, 128
        %362 = vxpose.xlu0.b32.cont [15/16] %v282, 128
        %363 = vxpose.xlu0.b32.end [16/16] %v283, 128
        %v364 = vpop.trf.xlu0
        %v365 = vpop.trf.xlu0
        %v366 = vpop.trf.xlu0
        %v367 = vpop.trf.xlu0
        %v368 = vpop.trf.xlu0
        %v369 = vpop.trf.xlu0
        %v370 = vpop.trf.xlu0
        %v371 = vpop.trf.xlu0
        %v372 = vpop.trf.xlu0
        %v373 = vpop.trf.xlu0
        %v374 = vpop.trf.xlu0
        %v375 = vpop.trf.xlu0
        %v376 = vpop.trf.xlu0
        %v377 = vpop.trf.xlu0
        %v378 = vpop.trf.xlu0
        %v379 = vpop.trf.xlu0
        %380 = vmatprep.subr.mxu0 0.0
        %381 = vmatpush1.msra.mxu0 %v299
        %382 = vmatprep.subr.mxu0 0.0
        %383 = vmatpush1.msra.mxu0 %v298
        %384 = vmatprep.subr.mxu0 0.0
        %385 = vmatpush1.msra.mxu0 %v297
        %386 = vmatprep.subr.mxu0 0.0
        %387 = vmatpush1.msra.mxu0 %v296
        %388 = vmatprep.subr.mxu0 0.0
        %389 = vmatpush1.msra.mxu0 %v295
        %390 = vmatprep.subr.mxu0 0.0
        %391 = vmatpush1.msra.mxu0 %v294
        %392 = vmatprep.subr.mxu0 0.0
        %393 = vmatpush1.msra.mxu0 %v293
        %394 = vmatprep.subr.mxu0 0.0
        %395 = vmatpush1.msra.mxu0 %v292
        %396 = vmatprep.subr.mxu0 0.0
        %397 = vmatpush1.msra.mxu0 %v291
        %398 = vmatprep.subr.mxu0 0.0
        %399 = vmatpush1.msra.mxu0 %v290
        %400 = vmatprep.subr.mxu0 0.0
        %401 = vmatpush1.msra.mxu0 %v289
        %402 = vmatprep.subr.mxu0 0.0
        %403 = vmatpush1.msra.mxu0 %v288
        %404 = vmatprep.subr.mxu0 0.0
        %405 = vmatpush1.msra.mxu0 %v287
        %406 = vmatprep.subr.mxu0 0.0
        %407 = vmatpush1.msra.mxu0 %v286
        %408 = vmatprep.subr.mxu0 0.0
        %409 = vmatpush1.msra.mxu0 %v285
        %410 = vmatprep.subr.mxu0 0.0
        %411 = vmatpush1.msra.mxu0 %v284
        %412 = vmatprep.subr.mxu0 0.0
        %413 = vmatpush2.msra.mxu0 %v315
        %414 = vmatprep.subr.mxu0 0.0
        %415 = vmatpush2.msra.mxu0 %v314
        %416 = vmatprep.subr.mxu0 0.0
        %417 = vmatpush2.msra.mxu0 %v313
        %418 = vmatprep.subr.mxu0 0.0
        %419 = vmatpush2.msra.mxu0 %v312
        %420 = vmatprep.subr.mxu0 0.0
        %421 = vmatpush2.msra.mxu0 %v311
        %422 = vmatprep.subr.mxu0 0.0
        %423 = vmatpush2.msra.mxu0 %v310
        %424 = vmatprep.subr.mxu0 0.0
        %425 = vmatpush2.msra.mxu0 %v309
        %426 = vmatprep.subr.mxu0 0.0
        %427 = vmatpush2.msra.mxu0 %v308
        %428 = vmatprep.subr.mxu0 0.0
        %429 = vmatpush2.msra.mxu0 %v307
        %430 = vmatprep.subr.mxu0 0.0
        %431 = vmatpush2.msra.mxu0 %v306
        %432 = vmatprep.subr.mxu0 0.0
        %433 = vmatpush2.msra.mxu0 %v305
        %434 = vmatprep.subr.mxu0 0.0
        %435 = vmatpush2.msra.mxu0 %v304
        %436 = vmatprep.subr.mxu0 0.0
        %437 = vmatpush2.msra.mxu0 %v303
        %438 = vmatprep.subr.mxu0 0.0
        %439 = vmatpush2.msra.mxu0 %v302
        %440 = vmatprep.subr.mxu0 0.0
        %441 = vmatpush2.msra.mxu0 %v301
        %442 = vmatprep.subr.mxu0 0.0
        %443 = vmatpush2.msra.mxu0 %v300
        %444 = vmatprep.mubr.f32.mxu0 %v364
        %445 = vmatmul.mubr.f32.gmra.mxu0 %v332
        %v446 = vpop.f32.mrf.mxu0
        %v447 = vadd.f32 0.0, %v446
        %v448 = vpop.f32.mrf.mxu0
        %449 = vmatprep.mubr.f32.mxu0 %v365
        %450 = vmatmul.mubr.f32.gmra.mxu0 %v333
        %v451 = vpop.f32.mrf.mxu0
        %v452 = vadd.f32 0.0, %v451
        %v453 = vpop.f32.mrf.mxu0
        %454 = vmatprep.mubr.f32.mxu0 %v366
        %455 = vmatmul.mubr.f32.gmra.mxu0 %v334
        %v456 = vpop.f32.mrf.mxu0
        %v457 = vadd.f32 0.0, %v456
        %v458 = vpop.f32.mrf.mxu0
        %459 = vmatprep.mubr.f32.mxu0 %v367
        %460 = vmatmul.mubr.f32.gmra.mxu0 %v335
        %v461 = vpop.f32.mrf.mxu0
        %v462 = vadd.f32 0.0, %v461
        %v463 = vpop.f32.mrf.mxu0
        %464 = vmatprep.mubr.f32.mxu0 %v368
        %465 = vmatmul.mubr.f32.gmra.mxu0 %v336
        %v466 = vpop.f32.mrf.mxu0
        %v467 = vadd.f32 0.0, %v466
        %v468 = vpop.f32.mrf.mxu0
        %469 = vmatprep.mubr.f32.mxu0 %v369
        %470 = vmatmul.mubr.f32.gmra.mxu0 %v337
        %v471 = vpop.f32.mrf.mxu0
        %v472 = vadd.f32 0.0, %v471
        %v473 = vpop.f32.mrf.mxu0
        %474 = vmatprep.mubr.f32.mxu0 %v370
        %475 = vmatmul.mubr.f32.gmra.mxu0 %v338
        %v476 = vpop.f32.mrf.mxu0
        %v477 = vadd.f32 0.0, %v476
        %v478 = vpop.f32.mrf.mxu0
        %479 = vmatprep.mubr.f32.mxu0 %v371
        %480 = vmatmul.mubr.f32.gmra.mxu0 %v339
        %v481 = vpop.f32.mrf.mxu0
        %v482 = vadd.f32 0.0, %v481
        %v483 = vpop.f32.mrf.mxu0
        %484 = vmatprep.mubr.f32.mxu0 %v372
        %485 = vmatmul.mubr.f32.gmra.mxu0 %v340
        %v486 = vpop.f32.mrf.mxu0
        %v487 = vadd.f32 0.0, %v486
        %v488 = vpop.f32.mrf.mxu0
        %489 = vmatprep.mubr.f32.mxu0 %v373
        %490 = vmatmul.mubr.f32.gmra.mxu0 %v341
        %v491 = vpop.f32.mrf.mxu0
        %v492 = vadd.f32 0.0, %v491
        %v493 = vpop.f32.mrf.mxu0
        %494 = vmatprep.mubr.f32.mxu0 %v374
        %495 = vmatmul.mubr.f32.gmra.mxu0 %v342
        %v496 = vpop.f32.mrf.mxu0
        %v497 = vadd.f32 0.0, %v496
        %v498 = vpop.f32.mrf.mxu0
        %499 = vmatprep.mubr.f32.mxu0 %v375
        %500 = vmatmul.mubr.f32.gmra.mxu0 %v343
        %v501 = vpop.f32.mrf.mxu0
        %v502 = vadd.f32 0.0, %v501
        %v503 = vpop.f32.mrf.mxu0
        %504 = vmatprep.mubr.f32.mxu0 %v376
        %505 = vmatmul.mubr.f32.gmra.mxu0 %v344
        %v506 = vpop.f32.mrf.mxu0
        %v507 = vadd.f32 0.0, %v506
        %v508 = vpop.f32.mrf.mxu0
        %509 = vmatprep.mubr.f32.mxu0 %v377
        %510 = vmatmul.mubr.f32.gmra.mxu0 %v345
        %v511 = vpop.f32.mrf.mxu0
        %v512 = vadd.f32 0.0, %v511
        %v513 = vpop.f32.mrf.mxu0
        %514 = vmatprep.mubr.f32.mxu0 %v378
        %515 = vmatmul.mubr.f32.gmra.mxu0 %v346
        %v516 = vpop.f32.mrf.mxu0
        %v517 = vadd.f32 0.0, %v516
        %v518 = vpop.f32.mrf.mxu0
        %519 = vmatprep.mubr.f32.mxu0 %v379
        %520 = vmatmul.mubr.f32.gmra.mxu0 %v347
        %v521 = vpop.f32.mrf.mxu0
        %v522 = vadd.f32 0.0, %v521
        %v523 = vpop.f32.mrf.mxu0
        %524 = vdwg.mxu0
        %v525 = vadd.f32 %v236, %v447
        %v526 = vadd.f32 %v237, %v452
        %v527 = vadd.f32 %v238, %v457
        %v528 = vadd.f32 %v239, %v462
        %v529 = vadd.f32 %v240, %v467
        %v530 = vadd.f32 %v241, %v472
        %v531 = vadd.f32 %v242, %v477
        %v532 = vadd.f32 %v243, %v482
        %v533 = vadd.f32 %v244, %v487
        %v534 = vadd.f32 %v245, %v492
        %v535 = vadd.f32 %v246, %v497
        %v536 = vadd.f32 %v247, %v502
        %v537 = vadd.f32 %v248, %v507
        %v538 = vadd.f32 %v249, %v512
        %v539 = vadd.f32 %v250, %v517
        %v540 = vadd.f32 %v251, %v522
        %541 = vst [vmem:[%s212] sm:$0xff] %v525
        %542 = vst [vmem:[%s212 + $0x8] sm:$0xff] %v526
        %543 = vst [vmem:[%s212 + $0x10] sm:$0xff] %v527
        %544 = vst [vmem:[%s212 + $0x18] sm:$0xff] %v528
        %545 = vst [vmem:[%s212 + $0x20] sm:$0xff] %v529
        %546 = vst [vmem:[%s212 + $0x28] sm:$0xff] %v530
        %547 = vst [vmem:[%s212 + $0x30] sm:$0xff] %v531
        %548 = vst [vmem:[%s212 + $0x38] sm:$0xff] %v532
        %549 = vst [vmem:[%s212 + $0x40] sm:$0xff] %v533
        %550 = vst [vmem:[%s212 + $0x48] sm:$0xff] %v534
        %551 = vst [vmem:[%s212 + $0x50] sm:$0xff] %v535
        %552 = vst [vmem:[%s212 + $0x58] sm:$0xff] %v536
        %553 = vst [vmem:[%s212 + $0x60] sm:$0xff] %v537
        %554 = vst [vmem:[%s212 + $0x68] sm:$0xff] %v538
        %555 = vst [vmem:[%s212 + $0x70] sm:$0xff] %v539
        %556 = vst [vmem:[%s212 + $0x78] sm:$0xff] %v540
        %s557 = sand.u32 %s105, 1
        %s558 = scalar_lea.sflag [#allocation4], %s557
        %s559 = sand.u32 %s105, 1
        %s560 = smul.addr %s559, 128
        %s561 = scalar_lea.vmem [#allocation7], %s560
        // Predicated region
        $region41: #{tpu_custom_call.1} parent=27 // pred_check
          %p562 = pneg %p115
        $region42: #{tpu_custom_call.1} parent=27 // pred_check_branch
          %564 = sbr.rel (%p562) target = $region44
        $region43: #{tpu_custom_call.1} parent=27 // pred_region
          %s565 = smul.u32 16, %s25
          %s567 = ssub.s32 2048, 2048
          %568 = vsyncadd %s558, %s567
          %s569 = sadd.s32 %s26, %s565
          %s570 = smul.addr %s569, 128
          %s571 = scalar_lea.hbm %s2, %s570
          %s572 = sshll.u32 %s561, 4
          %s573 = int_to_ptr.vmem [resolvable:$true] %s572
          %578 = dma.vmem_to_hbm [thread:$0]  %s573, 2048, %s571, %s558, 128, 128, 8
        $region44: #{tpu_custom_call.1} parent=27 // pred_fallthru
          _
      $region28: #{tpu_custom_call.1} parent=5 // pred_fallthru
        _
      %p579 = scmp.le.s32.totalorder 2, %s15
      // Predicated region
      $region45: #{tpu_custom_call.1} parent=5 // pred_check
        %p580 = pneg %p579
      $region46: #{tpu_custom_call.1} parent=5 // pred_check_branch
        %582 = sbr.rel (%p580) target = $region48
      $region47: #{tpu_custom_call.1} parent=5 // pred_region
        %s583 = ssub.s32 %s15, 2
        // Predicated region
        $region49: #{tpu_custom_call.1} parent=47 // pred_check
          %p584 = pneg %p121
        $region50: #{tpu_custom_call.1} parent=47 // pred_check_branch
          %586 = sbr.rel (%p584) target = $region52
        $region51: #{tpu_custom_call.1} parent=47 // pred_region
          %s587 = sand.u32 %s106, 1
          %s588 = scalar_lea.sflag [#allocation4], %s587
          %s589 = sand.u32 %s106, 1
          %s590 = smul.addr %s589, 128
          %s591 = scalar_lea.vmem [#allocation7], %s590
          %592 = dma.done %s588, 2048
        $region52: #{tpu_custom_call.1} parent=47 // pred_fallthru
          _
      $region48: #{tpu_custom_call.1} parent=5 // pred_fallthru
        _
    $region6: #{tpu_custom_call.1} parent=1 // loop_footer
      %s19 = sadd.s32 1, %s15
    $region7: #{tpu_custom_call.1} parent=1 // loop_footer_branch
      %14 = sbr.rel target = $region3
    $region8: #{tpu_custom_call.1} parent=1 // loop_exit
      _
    %593 = vsyncpa [#allocation3], 1
    %s594 = scalar_lea.sflag [#allocation3], 1
    %595 = vsyncpa %s594, 1
    %596 = vsyncpa [#allocation6], 1
    %597 = vsyncpa [#allocation4], 1
    %s598 = scalar_lea.sflag [#allocation4], 1
    %599 = vsyncpa %s598, 1

</llo_original>
